<compile_context>
chip_gen: v6e
topology: v6e:2x2x1
jax: 0.10.0
libtpu: 0.0.40
codegen_flags: <defaults>
</compile_context>

<pallas_src>
import jax
import jax.numpy as jnp
from jax.experimental import pallas as pl
from jax.experimental.pallas import tpu as pltpu


def _round_up(x, m):
    return ((x + m - 1) // m) * m


def rnn_seq_kernel(x_ref, h0_ref, w_cat_ref, b_cat_ref, w_io_ref, b_io_ref,
                   out_ref, h_out_ref):
    """One timestep per grid step. h_out_ref doubles as the resident hidden state."""
    t = pl.program_id(0)

    @pl.when(t == 0)
    def _():
        h_out_ref[...] = h0_ref[...]

    x = x_ref[0]                     # (B_P, IN_P)
    h = h_out_ref[...]               # (B_P, HID_P)  -- VMEM-resident carry

    # Fused i2h + h2h: one MXU pass over the concatenated contraction dim.
    xh = jnp.concatenate([x, h], axis=-1)              # (B_P, IN_P + HID_P)
    pre = jnp.dot(xh, w_cat_ref[...],
                  preferred_element_type=jnp.float32) + b_cat_ref[...]
    h_new = jnp.tanh(pre)
    h_out_ref[...] = h_new           # carry; written to HBM only after last step

    out = jnp.dot(h_new, w_io_ref[...],
                  preferred_element_type=jnp.float32) + b_io_ref[...]
    out_ref[0] = out.astype(out_ref.dtype)             # lane-dense (B_P, OUT_P) store


def rnn_sequence(xs, h0, params):
    """Run T RNN steps. xs: (T, B, input), h0: (B, hidden).

    Returns (outputs (T, B, output), final_hidden (B, hidden)).
    """
    w_ih, b_ih, w_hh, b_hh, w_io, b_io = params
    T, B, input_size = xs.shape
    hidden_size = w_ih.shape[1]
    output_size = w_io.shape[1]

    B_P = _round_up(B, 8)
    IN_P = _round_up(input_size, 128)
    HID_P = _round_up(hidden_size, 128)
    OUT_P = _round_up(output_size, 128)

    f32 = jnp.float32
    # Fused, zero-padded weights/biases.
    w_cat = jnp.zeros((IN_P + HID_P, HID_P), f32)
    w_cat = w_cat.at[:input_size, :hidden_size].set(w_ih)
    w_cat = w_cat.at[IN_P:IN_P + hidden_size, :hidden_size].set(w_hh)
    b_cat = jnp.zeros((1, HID_P), f32)
    b_cat = b_cat.at[:, :hidden_size].set(b_ih.reshape(1, -1) + b_hh.reshape(1, -1))
    w_io_p = jnp.zeros((HID_P, OUT_P), f32).at[:hidden_size, :output_size].set(w_io)
    b_io_p = jnp.zeros((1, OUT_P), f32).at[:, :output_size].set(b_io.reshape(1, -1))

    # Zero-padded activations.
    xs_p = jnp.zeros((T, B_P, IN_P), f32).at[:, :B, :input_size].set(xs)
    h0_p = jnp.zeros((B_P, HID_P), f32).at[:B, :hidden_size].set(h0)

    cost = pl.CostEstimate(
        flops=T * (2 * B_P * (IN_P + HID_P) * HID_P + 2 * B_P * HID_P * OUT_P),
        transcendentals=T * B_P * HID_P,
        bytes_accessed=4 * (xs_p.size + h0_p.size + w_cat.size + b_cat.size
                            + w_io_p.size + b_io_p.size
                            + T * B_P * OUT_P + B_P * HID_P),
    )

    out_p, h_p = pl.pallas_call(
        rnn_seq_kernel,
        out_shape=(
            jax.ShapeDtypeStruct((T, B_P, OUT_P), f32),
            jax.ShapeDtypeStruct((B_P, HID_P), f32),
        ),
        grid=(T,),
        in_specs=[
            pl.BlockSpec((1, B_P, IN_P), lambda t: (t, 0, 0)),      # x_t streamed
            pl.BlockSpec((B_P, HID_P), lambda t: (0, 0)),           # h0 (resident)
            pl.BlockSpec((IN_P + HID_P, HID_P), lambda t: (0, 0)),  # W_cat (resident)
            pl.BlockSpec((1, HID_P), lambda t: (0, 0)),             # b_cat (resident)
            pl.BlockSpec((HID_P, OUT_P), lambda t: (0, 0)),         # W_io  (resident)
            pl.BlockSpec((1, OUT_P), lambda t: (0, 0)),             # b_io  (resident)
        ],
        out_specs=(
            pl.BlockSpec((1, B_P, OUT_P), lambda t: (t, 0, 0)),     # per-step output
            pl.BlockSpec((B_P, HID_P), lambda t: (0, 0)),           # final hidden
        ),
        compiler_params=pltpu.CompilerParams(
            dimension_semantics=("arbitrary",),                     # recurrent axis
        ),
        cost_estimate=cost,
    )(xs_p, h0_p, w_cat, b_cat, w_io_p, b_io_p)

    return out_p[:, :B, :output_size], h_p[:B, :hidden_size]


def rnn_forward(x, h, params):
    """Single RNN step == PyTorch RNN.forward(input, hidden)."""
    out_seq, h_new = rnn_sequence(x[None], h, params)
    return out_seq[0], h_new


def init_params(key, input_size, hidden_size, output_size):
    """Deterministic init mirroring nn.Linear shapes (weights stored transposed)."""
    ks = jax.random.split(key, 6)

    def linear(kw, kb, fan_in, fan_out):
        bound = 1.0 / jnp.sqrt(fan_in)
        w = jax.random.uniform(kw, (fan_in, fan_out), jnp.float32, -bound, bound)
        b = jax.random.uniform(kb, (1, fan_out), jnp.float32, -bound, bound)
        return w, b

    w_ih, b_ih = linear(ks[0], ks[1], input_size, hidden_size)
    w_hh, b_hh = linear(ks[2], ks[3], hidden_size, hidden_size)
    w_io, b_io = linear(ks[4], ks[5], hidden_size, output_size)
    return (w_ih, b_ih, w_hh, b_hh, w_io, b_io)


def rnn_reference_step(x, h, params):
    w_ih, b_ih, w_hh, b_hh, w_io, b_io = params
    h_new = jnp.tanh(x @ w_ih + b_ih + h @ w_hh + b_hh)
    out = h_new @ w_io + b_io
    return out, h_new


def rnn_reference_sequence(xs, h0, params):
    def step(h, x):
        out, h_new = rnn_reference_step(x, h, params)
        return h_new, out
    h_final, outs = jax.lax.scan(step, h0, xs)
    return outs, h_final


if __name__ == "__main__":
    input_size, hidden_size, output_size = 16, 32, 8
    batch, seq_len = 2, 8

    key = jax.random.PRNGKey(0)
    k_x, k_p = jax.random.split(key, 2)

    xs = jax.random.normal(k_x, (seq_len, batch, input_size), jnp.float32)
    # init_hidden() in PyTorch returns zeros(1, hidden) — broadcast to batch.
    h0 = jnp.zeros((batch, hidden_size), jnp.float32)

    params = init_params(k_p, input_size, hidden_size, output_size)

    # Full-sequence kernel (grid=(T,), resident weights, VMEM-carried hidden).
    outs, h_final = rnn_sequence(xs, h0, params)
    outs = jax.block_until_ready(outs)
    h_final = jax.block_until_ready(h_final)

    outs_ref, h_final_ref = rnn_reference_sequence(xs, h0, params)
    assert outs.shape == (seq_len, batch, output_size)
    assert h_final.shape == (batch, hidden_size)
    assert jnp.allclose(outs, outs_ref, atol=1e-5, rtol=1e-5)
    assert jnp.allclose(h_final, h_final_ref, atol=1e-5, rtol=1e-5)

    # Single-step path == original PyTorch forward(input, hidden).
    out1, h1 = rnn_forward(xs[0], h0, params)
    out1 = jax.block_until_ready(out1)
    out1_ref, h1_ref = rnn_reference_step(xs[0], h0, params)
    assert jnp.allclose(out1, out1_ref, atol=1e-5, rtol=1e-5)
    assert jnp.allclose(h1, h1_ref, atol=1e-5, rtol=1e-5)

    print("KERNEL_OK")
</pallas_src>

<mosaic_0001>
module attributes {stable_mosaic.version = 11 : i64} {
  func.func @rnn_seq_kernel(%arg0: i32, %arg1: memref<1x8x128xf32, #tpu.memory_space<vmem>>, %arg2: memref<8x128xf32, #tpu.memory_space<vmem>>, %arg3: memref<256x128xf32, #tpu.memory_space<vmem>>, %arg4: memref<1x128xf32, #tpu.memory_space<vmem>>, %arg5: memref<128x128xf32, #tpu.memory_space<vmem>>, %arg6: memref<1x128xf32, #tpu.memory_space<vmem>>, %arg7: memref<1x8x128xf32, #tpu.memory_space<vmem>>, %arg8: memref<8x128xf32, #tpu.memory_space<vmem>>) attributes {dimension_semantics = [#tpu.dimension_semantics<arbitrary>], iteration_bounds = array<i64: 8>, scalar_prefetch = 0 : i64, scratch_operands = 0 : i64, tpu.core_type = #tpu.core_type<tc>, window_params = [{transform_indices = @transform_0, window_bounds = array<i64: 1, 8, 128>}, {pipeline_mode = #tpu.pipeline_mode<synchronous>, transform_indices = @transform_1, window_bounds = array<i64: 8, 128>}, {pipeline_mode = #tpu.pipeline_mode<synchronous>, transform_indices = @transform_2, window_bounds = array<i64: 256, 128>}, {pipeline_mode = #tpu.pipeline_mode<synchronous>, transform_indices = @transform_3, window_bounds = array<i64: 1, 128>}, {pipeline_mode = #tpu.pipeline_mode<synchronous>, transform_indices = @transform_4, window_bounds = array<i64: 128, 128>}, {pipeline_mode = #tpu.pipeline_mode<synchronous>, transform_indices = @transform_5, window_bounds = array<i64: 1, 128>}, {transform_indices = @transform_6, window_bounds = array<i64: 1, 8, 128>}, {pipeline_mode = #tpu.pipeline_mode<synchronous>, transform_indices = @transform_7, window_bounds = array<i64: 8, 128>}]} {
    %c0_i32 = arith.constant 0 : i32
    %0 = arith.cmpi eq, %arg0, %c0_i32 : i32
    %1 = arith.extui %0 : i1 to i32
    %c0_i32_0 = arith.constant 0 : i32
    %2 = arith.cmpi ne, %1, %c0_i32_0 : i32
    scf.if %2 {
      %c0_19 = arith.constant 0 : index
      %c0_20 = arith.constant 0 : index
      %22 = vector.load %arg2[%c0_19, %c0_20] : memref<8x128xf32, #tpu.memory_space<vmem>>, vector<8x128xf32>
      %c0_21 = arith.constant 0 : index
      %c0_22 = arith.constant 0 : index
      %23 = vector.load %arg8[%c0_21, %c0_22] : memref<8x128xf32, #tpu.memory_space<vmem>>, vector<8x128xf32>
      tpu.vector_store %arg8[%c0_21, %c0_22], %22 {strides = array<i32>} : memref<8x128xf32, #tpu.memory_space<vmem>>, vector<8x128xf32>,
    } else {
    }
    %c0 = arith.constant 0 : index
    %c0_1 = arith.constant 0 : index
    %c0_2 = arith.constant 0 : index
    %3 = vector.load %arg1[%c0, %c0_1, %c0_2] : memref<1x8x128xf32, #tpu.memory_space<vmem>>, vector<1x8x128xf32>
    %4 = vector.shape_cast %3 : vector<1x8x128xf32> to vector<8x128xf32>
    %c0_3 = arith.constant 0 : index
    %c0_4 = arith.constant 0 : index
    %5 = vector.load %arg8[%c0_3, %c0_4] : memref<8x128xf32, #tpu.memory_space<vmem>>, vector<8x128xf32>
    %6 = tpu.concatenate %4, %5 in 1 : vector<8x128xf32>, vector<8x128xf32> -> vector<8x256xf32>
    %c0_5 = arith.constant 0 : index
    %c0_6 = arith.constant 0 : index
    %7 = vector.load %arg3[%c0_5, %c0_6] : memref<256x128xf32, #tpu.memory_space<vmem>>, vector<256x128xf32>
    %cst = arith.constant dense<0.000000e+00> : vector<8x128xf32>
    %8 = tpu.matmul %6, %7, %cst {dimension_numbers = #tpu.dot_dimension_numbers<[1], [0], [0], [1], [0, 0, 1, 1], [], []>} : vector<8x256xf32>, vector<256x128xf32>, vector<8x128xf32> -> vector<8x128xf32>
    %c0_7 = arith.constant 0 : index
    %c0_8 = arith.constant 0 : index
    %9 = vector.load %arg4[%c0_7, %c0_8] : memref<1x128xf32, #tpu.memory_space<vmem>>, vector<1x128xf32>
    %10 = vector.broadcast %9 : vector<1x128xf32> to vector<8x128xf32>
    %11 = arith.addf %8, %10 : vector<8x128xf32>
    %12 = math.tanh %11 : vector<8x128xf32>
    %c0_9 = arith.constant 0 : index
    %c0_10 = arith.constant 0 : index
    %13 = vector.load %arg8[%c0_9, %c0_10] : memref<8x128xf32, #tpu.memory_space<vmem>>, vector<8x128xf32>
    tpu.vector_store %arg8[%c0_9, %c0_10], %12 {strides = array<i32>} : memref<8x128xf32, #tpu.memory_space<vmem>>, vector<8x128xf32>,
    %c0_11 = arith.constant 0 : index
    %c0_12 = arith.constant 0 : index
    %14 = vector.load %arg5[%c0_11, %c0_12] : memref<128x128xf32, #tpu.memory_space<vmem>>, vector<128x128xf32>
    %cst_13 = arith.constant dense<0.000000e+00> : vector<8x128xf32>
    %15 = tpu.matmul %12, %14, %cst_13 {dimension_numbers = #tpu.dot_dimension_numbers<[1], [0], [0], [1], [0, 0, 1, 1], [], []>} : vector<8x128xf32>, vector<128x128xf32>, vector<8x128xf32> -> vector<8x128xf32>
    %c0_14 = arith.constant 0 : index
    %c0_15 = arith.constant 0 : index
    %16 = vector.load %arg6[%c0_14, %c0_15] : memref<1x128xf32, #tpu.memory_space<vmem>>, vector<1x128xf32>
    %17 = vector.broadcast %16 : vector<1x128xf32> to vector<8x128xf32>
    %18 = arith.addf %15, %17 : vector<8x128xf32>
    %c0_16 = arith.constant 0 : index
    %c0_17 = arith.constant 0 : index
    %c0_18 = arith.constant 0 : index
    %19 = vector.load %arg7[%c0_16, %c0_17, %c0_18] : memref<1x8x128xf32, #tpu.memory_space<vmem>>, vector<1x8x128xf32>
    %20 = vector.shape_cast %19 : vector<1x8x128xf32> to vector<8x128xf32>
    %21 = vector.shape_cast %18 : vector<8x128xf32> to vector<1x8x128xf32>
    tpu.vector_store %arg7[%c0_16, %c0_17, %c0_18], %21 {strides = array<i32>} : memref<1x8x128xf32, #tpu.memory_space<vmem>>, vector<1x8x128xf32>,
    return
  }
  func.func @transform_0(%arg0: i32) -> (i32, i32, i32) {
    %c0_i32 = arith.constant 0 : i32
    %c0_i32_0 = arith.constant 0 : i32
    %c0_i32_1 = arith.constant 0 : i32
    return %arg0, %c0_i32, %c0_i32_0 : i32, i32, i32
  }
  func.func @transform_1(%arg0: i32) -> (i32, i32) {
    %c0_i32 = arith.constant 0 : i32
    %c0_i32_0 = arith.constant 0 : i32
    %c0_i32_1 = arith.constant 0 : i32
    return %c0_i32, %c0_i32_0 : i32, i32
  }
  func.func @transform_2(%arg0: i32) -> (i32, i32) {
    %c0_i32 = arith.constant 0 : i32
    %c0_i32_0 = arith.constant 0 : i32
    %c0_i32_1 = arith.constant 0 : i32
    return %c0_i32, %c0_i32_0 : i32, i32
  }
  func.func @transform_3(%arg0: i32) -> (i32, i32) {
    %c0_i32 = arith.constant 0 : i32
    %c0_i32_0 = arith.constant 0 : i32
    %c0_i32_1 = arith.constant 0 : i32
    return %c0_i32, %c0_i32_0 : i32, i32
  }
  func.func @transform_4(%arg0: i32) -> (i32, i32) {
    %c0_i32 = arith.constant 0 : i32
    %c0_i32_0 = arith.constant 0 : i32
    %c0_i32_1 = arith.constant 0 : i32
    return %c0_i32, %c0_i32_0 : i32, i32
  }
  func.func @transform_5(%arg0: i32) -> (i32, i32) {
    %c0_i32 = arith.constant 0 : i32
    %c0_i32_0 = arith.constant 0 : i32
    %c0_i32_1 = arith.constant 0 : i32
    return %c0_i32, %c0_i32_0 : i32, i32
  }
  func.func @transform_6(%arg0: i32) -> (i32, i32, i32) {
    %c0_i32 = arith.constant 0 : i32
    %c0_i32_0 = arith.constant 0 : i32
    %c0_i32_1 = arith.constant 0 : i32
    return %arg0, %c0_i32, %c0_i32_0 : i32, i32, i32
  }
  func.func @transform_7(%arg0: i32) -> (i32, i32) {
    %c0_i32 = arith.constant 0 : i32
    %c0_i32_0 = arith.constant 0 : i32
    %c0_i32_1 = arith.constant 0 : i32
    return %c0_i32, %c0_i32_0 : i32, i32
  }
}

</mosaic_0001>

<llo_original>
// kernel: tpu_custom_call.1
$region0: #{tpu_custom_call.1}
  #allocation0 [shape = 'u32[]', space=smem, size = 0x4, offset = 0x4, fixed_abs, tag = 'smem constant byte address 0x4 - core index']
  #allocation1 [shape = 'u32[144,128]{1,0:T(1,128)}', space=vmem, size = 0x12000, scoped, tag = 'internal scratch']
  %s0 = inlined_call_operand.hbm [shape: f32[8,8,128], index: 0, kind: input, shape index: {}]
  %s1 = inlined_call_operand.hbm [shape: f32[8,128], index: 1, kind: input, shape index: {}]
  %s2 = inlined_call_operand.hbm [shape: f32[256,128], index: 2, kind: input, shape index: {}]
  %s3 = inlined_call_operand.vmem [shape: f32[1,128], index: 3, kind: input, shape index: {}]
  %s4 = inlined_call_operand.hbm [shape: f32[128,128], index: 4, kind: input, shape index: {}]
  %s5 = inlined_call_operand.vmem [shape: f32[1,128], index: 5, kind: input, shape index: {}]
  %s6 = inlined_call_operand.hbm [shape: f32[8,8,128], index: 6, kind: output, shape index: {0}]
  %s7 = inlined_call_operand.hbm [shape: f32[8,128], index: 7, kind: output, shape index: {1}]
  %8 = xla_tuple %s6, %s7
  %s9 = sld [smem:[#allocation0]]
  $region85: #{tpu_custom_call.1} parent=0
    _
  %s11 = ssub.s32 1, %s9
  %s12 = scalar_select 0, %s11, %s9
  $region1: #{tpu_custom_call.1} parent=0
    #allocation2 [shape = 'u8[8192]{0}', space=vmem, size = 0x2000, scoped, tag = 'input window, operand 0']
    #allocation3 [shape = 's32[2]{0}', space=sflag, size = 0x8, scoped, tag = 'scoped memory for tpu_custom_call.1']
    #allocation4 [shape = 's32[2]{0}', space=sflag, size = 0x8, scoped, tag = 'scoped memory for tpu_custom_call.1']
    #allocation5 [shape = 'u8[4096]{0}', space=vmem, size = 0x1000, scoped, tag = 'input window, operand 1, single buffered']
    #allocation6 [shape = 's32[1]{0}', space=sflag, size = 0x4, scoped, tag = 'scoped memory for tpu_custom_call.1']
    #allocation7 [shape = 'u8[131072]{0}', space=vmem, size = 0x20000, scoped, tag = 'input window, operand 2, single buffered']
    #allocation8 [shape = 'u8[65536]{0}', space=vmem, size = 0x10000, scoped, tag = 'input window, operand 4, single buffered']
    #allocation9 [shape = 's32[1]{0}', space=sflag, size = 0x4, scoped, tag = 'scoped memory for tpu_custom_call.1']
    #allocation10 [shape = 'u8[8192]{0}', space=vmem, size = 0x2000, scoped, tag = 'output window, operand 0']
    #allocation11 [shape = 'u8[4096]{0}', space=vmem, size = 0x1000, scoped, tag = 'output window, operand 1, single buffered']
    #allocation12 [shape = 's32[1]{0}', space=sflag, size = 0x4, scoped, tag = 'scoped memory for tpu_custom_call.1']
    %13 = vsyncpa [#allocation3], 0
    %s14 = scalar_lea.sflag [#allocation3], 1
    %15 = vsyncpa %s14, 0
    %16 = vsyncpa [#allocation6], 0
    %17 = vsyncpa [#allocation9], 0
    %18 = vsyncpa [#allocation4], 0
    %s19 = scalar_lea.sflag [#allocation4], 1
    %20 = vsyncpa %s19, 0
    %21 = vsyncpa [#allocation12], 0
    loop: start=0, step=1, limit=10
    $region2: #{tpu_custom_call.1} parent=1 // loop_pre_header
      _
    $region3: #{tpu_custom_call.1} parent=1 // loop_header
      %s23 = sphi 0, %s27
      %p24 = scmp.ge.s32.totalorder %s23, 10
      %s33 = sphi 0, %s35
      %s36 = sphi 0, %s33
      %s37 = sphi 0, %s36
      %s53 = sphi 0, %s37
      %s57 = sphi 0, %s57
      %s59 = sphi 0, %s57
      %s60 = sphi 0, %s59
      %s74 = sphi 0, %s60
      %s78 = sphi 0, %s78
      %s80 = sphi 0, %s78
      %s81 = sphi 0, %s80
      %s95 = sphi 0, %s81
      %s99 = sphi 0, %s99
      %s101 = sphi 0, %s99
      %s102 = sphi 0, %s101
      %s116 = sphi 0, %s102
      %s120 = sphi 0, %s120
      %s122 = sphi 0, %s120
      %s123 = sphi 0, %s122
      %s137 = sphi 0, %s123
      %s141 = sphi 0, %s141
      %s143 = sphi 0, %s141
      %s144 = sphi 0, %s143
      %s158 = sphi 0, %s144
      %s164 = sphi 0, %s166
      %s167 = sphi 0, %s164
      %s168 = sphi 0, %s167
      %s184 = sphi 0, %s168
      %s188 = sphi 0, %s188
      %s190 = sphi 0, %s188
      %s191 = sphi 0, %s190
      %s205 = sphi 0, %s191
    $region4: #{tpu_custom_call.1} parent=1 // loop_header_branch
      %26 = sbr.rel (%p24) target = $region8
    $region5: #{tpu_custom_call.1} parent=1 // loop_body
      %s28 = ssub.s32 %s23, 1
      %s29 = ssub.s32 %s23, 2
      %s30 = sadd.s32 %s23, 1
      %s31 = ssub.s32 %s23, %s30
      %p32 = scmp.eq.s32.totalorder %s31, 0
      %s34 = sadd.s32 %s33, 1
      %s35 = scalar_select %p32, %s33, %s34
      %p38 = pneg %p32
      %p39 = scmp.eq.s32.totalorder %s23, 7
      %p40 = por %p38, %p39
      %p41 = scmp.ne.s32.totalorder %s33, %s36
      %p42 = scmp.eq.s32.totalorder %s23, 0
      %p43 = por %p41, %p42
      %p44 = scmp.ne.s32.totalorder %s33, %s36
      %p45 = scmp.eq.s32.totalorder %s28, 7
      %p46 = por %p44, %p45
      %p47 = scmp.ne.s32.totalorder %s36, %s37
      %p48 = scmp.eq.s32.totalorder %s28, 0
      %p49 = por %p47, %p48
      %p50 = scmp.ne.s32.totalorder %s36, %s37
      %p51 = scmp.eq.s32.totalorder %s29, 7
      %p52 = por %p50, %p51
      %p54 = scmp.ne.s32.totalorder %s37, %s53
      %p55 = scmp.eq.s32.totalorder %s29, 0
      %p56 = por %p54, %p55
      %s58 = sadd.s32 %s57, 1
      %p61 = scmp.eq.s32.totalorder %s23, 7
      %p62 = scmp.ne.s32.totalorder %s57, %s59
      %p63 = scmp.eq.s32.totalorder %s23, 0
      %p64 = por %p62, %p63
      %p65 = scmp.ne.s32.totalorder %s57, %s59
      %p66 = scmp.eq.s32.totalorder %s28, 7
      %p67 = por %p65, %p66
      %p68 = scmp.ne.s32.totalorder %s59, %s60
      %p69 = scmp.eq.s32.totalorder %s28, 0
      %p70 = por %p68, %p69
      %p71 = scmp.ne.s32.totalorder %s59, %s60
      %p72 = scmp.eq.s32.totalorder %s29, 7
      %p73 = por %p71, %p72
      %p75 = scmp.ne.s32.totalorder %s60, %s74
      %p76 = scmp.eq.s32.totalorder %s29, 0
      %p77 = por %p75, %p76
      %s79 = sadd.s32 %s78, 1
      %p82 = scmp.eq.s32.totalorder %s23, 7
      %p83 = scmp.ne.s32.totalorder %s78, %s80
      %p84 = scmp.eq.s32.totalorder %s23, 0
      %p85 = por %p83, %p84
      %p86 = scmp.ne.s32.totalorder %s78, %s80
      %p87 = scmp.eq.s32.totalorder %s28, 7
      %p88 = por %p86, %p87
      %p89 = scmp.ne.s32.totalorder %s80, %s81
      %p90 = scmp.eq.s32.totalorder %s28, 0
      %p91 = por %p89, %p90
      %p92 = scmp.ne.s32.totalorder %s80, %s81
      %p93 = scmp.eq.s32.totalorder %s29, 7
      %p94 = por %p92, %p93
      %p96 = scmp.ne.s32.totalorder %s81, %s95
      %p97 = scmp.eq.s32.totalorder %s29, 0
      %p98 = por %p96, %p97
      %s100 = sadd.s32 %s99, 1
      %p103 = scmp.eq.s32.totalorder %s23, 7
      %p104 = scmp.ne.s32.totalorder %s99, %s101
      %p105 = scmp.eq.s32.totalorder %s23, 0
      %p106 = por %p104, %p105
      %p107 = scmp.ne.s32.totalorder %s99, %s101
      %p108 = scmp.eq.s32.totalorder %s28, 7
      %p109 = por %p107, %p108
      %p110 = scmp.ne.s32.totalorder %s101, %s102
      %p111 = scmp.eq.s32.totalorder %s28, 0
      %p112 = por %p110, %p111
      %p113 = scmp.ne.s32.totalorder %s101, %s102
      %p114 = scmp.eq.s32.totalorder %s29, 7
      %p115 = por %p113, %p114
      %p117 = scmp.ne.s32.totalorder %s102, %s116
      %p118 = scmp.eq.s32.totalorder %s29, 0
      %p119 = por %p117, %p118
      %s121 = sadd.s32 %s120, 1
      %p124 = scmp.eq.s32.totalorder %s23, 7
      %p125 = scmp.ne.s32.totalorder %s120, %s122
      %p126 = scmp.eq.s32.totalorder %s23, 0
      %p127 = por %p125, %p126
      %p128 = scmp.ne.s32.totalorder %s120, %s122
      %p129 = scmp.eq.s32.totalorder %s28, 7
      %p130 = por %p128, %p129
      %p131 = scmp.ne.s32.totalorder %s122, %s123
      %p132 = scmp.eq.s32.totalorder %s28, 0
      %p133 = por %p131, %p132
      %p134 = scmp.ne.s32.totalorder %s122, %s123
      %p135 = scmp.eq.s32.totalorder %s29, 7
      %p136 = por %p134, %p135
      %p138 = scmp.ne.s32.totalorder %s123, %s137
      %p139 = scmp.eq.s32.totalorder %s29, 0
      %p140 = por %p138, %p139
      %s142 = sadd.s32 %s141, 1
      %p145 = scmp.eq.s32.totalorder %s23, 7
      %p146 = scmp.ne.s32.totalorder %s141, %s143
      %p147 = scmp.eq.s32.totalorder %s23, 0
      %p148 = por %p146, %p147
      %p149 = scmp.ne.s32.totalorder %s141, %s143
      %p150 = scmp.eq.s32.totalorder %s28, 7
      %p151 = por %p149, %p150
      %p152 = scmp.ne.s32.totalorder %s143, %s144
      %p153 = scmp.eq.s32.totalorder %s28, 0
      %p154 = por %p152, %p153
      %p155 = scmp.ne.s32.totalorder %s143, %s144
      %p156 = scmp.eq.s32.totalorder %s29, 7
      %p157 = por %p155, %p156
      %p159 = scmp.ne.s32.totalorder %s144, %s158
      %p160 = scmp.eq.s32.totalorder %s29, 0
      %p161 = por %p159, %p160
      %s162 = ssub.s32 %s23, %s30
      %p163 = scmp.eq.s32.totalorder %s162, 0
      %s165 = sadd.s32 %s164, 1
      %s166 = scalar_select %p163, %s164, %s165
      %p169 = pneg %p163
      %p170 = scmp.eq.s32.totalorder %s23, 7
      %p171 = por %p169, %p170
      %p172 = scmp.ne.s32.totalorder %s164, %s167
      %p173 = scmp.eq.s32.totalorder %s23, 0
      %p174 = por %p172, %p173
      %p175 = scmp.ne.s32.totalorder %s164, %s167
      %p176 = scmp.eq.s32.totalorder %s28, 7
      %p177 = por %p175, %p176
      %p178 = scmp.ne.s32.totalorder %s167, %s168
      %p179 = scmp.eq.s32.totalorder %s28, 0
      %p180 = por %p178, %p179
      %p181 = scmp.ne.s32.totalorder %s167, %s168
      %p182 = scmp.eq.s32.totalorder %s29, 7
      %p183 = por %p181, %p182
      %p185 = scmp.ne.s32.totalorder %s168, %s184
      %p186 = scmp.eq.s32.totalorder %s29, 0
      %p187 = por %p185, %p186
      %s189 = sadd.s32 %s188, 1
      %p192 = scmp.eq.s32.totalorder %s23, 7
      %p193 = scmp.ne.s32.totalorder %s188, %s190
      %p194 = scmp.eq.s32.totalorder %s23, 0
      %p195 = por %p193, %p194
      %p196 = scmp.ne.s32.totalorder %s188, %s190
      %p197 = scmp.eq.s32.totalorder %s28, 7
      %p198 = por %p196, %p197
      %p199 = scmp.ne.s32.totalorder %s190, %s191
      %p200 = scmp.eq.s32.totalorder %s28, 0
      %p201 = por %p199, %p200
      %p202 = scmp.ne.s32.totalorder %s190, %s191
      %p203 = scmp.eq.s32.totalorder %s29, 7
      %p204 = por %p202, %p203
      %p206 = scmp.ne.s32.totalorder %s191, %s205
      %p207 = scmp.eq.s32.totalorder %s29, 0
      %p208 = por %p206, %p207
      %p209 = scmp.le.s32.totalorder 1, %s23
      %p210 = scmp.lt.s32.totalorder %s23, 9
      %p211 = pnand %p209, %p210
      %p212 = pneg %p211
      // Predicated region
      $region9: #{tpu_custom_call.1} parent=5 // pred_check
        _
      $region10: #{tpu_custom_call.1} parent=5 // pred_check_branch
        %214 = sbr.rel (%p211) target = $region12
      $region11: #{tpu_custom_call.1} parent=5 // pred_region
        %s215 = ssub.s32 %s23, 1
        // Predicated region
        $region13: #{tpu_custom_call.1} parent=11 // pred_check
          %p216 = pneg %p70
        $region14: #{tpu_custom_call.1} parent=11 // pred_check_branch
          %218 = sbr.rel (%p216) target = $region16
        $region15: #{tpu_custom_call.1} parent=11 // pred_region
          %s220 = ssub.s32 128, 128
          %221 = vsyncadd [#allocation6], %s220
          %s223 = sshll.u32 [#allocation5], 4
          %s224 = int_to_ptr.vmem [resolvable:$true] %s223
          %226 = dma.hbm_to_vmem [thread:$0]  %s1, 128, %s224, [#allocation6]
        $region16: #{tpu_custom_call.1} parent=11 // pred_fallthru
          _
        // Predicated region
        $region17: #{tpu_custom_call.1} parent=11 // pred_check
          %p227 = pneg %p91
        $region18: #{tpu_custom_call.1} parent=11 // pred_check_branch
          %229 = sbr.rel (%p227) target = $region20
        $region19: #{tpu_custom_call.1} parent=11 // pred_region
          %s231 = ssub.s32 4096, 4096
          %232 = vsyncadd [#allocation6], %s231
          %s233 = sshll.u32 [#allocation7], 4
          %s234 = int_to_ptr.vmem [resolvable:$true] %s233
          %239 = dma.hbm_to_vmem [thread:$0]  %s2, 4096, %s234, [#allocation6], 128, 128, 8
        $region20: #{tpu_custom_call.1} parent=11 // pred_fallthru
          _
        // Predicated region
        $region21: #{tpu_custom_call.1} parent=11 // pred_check
          %p240 = pneg %p112
        $region22: #{tpu_custom_call.1} parent=11 // pred_check_branch
          %242 = sbr.rel (%p240) target = $region24
        $region23: #{tpu_custom_call.1} parent=11 // pred_region
          _
        $region24: #{tpu_custom_call.1} parent=11 // pred_fallthru
          _
        // Predicated region
        $region25: #{tpu_custom_call.1} parent=11 // pred_check
          %p243 = pneg %p133
        $region26: #{tpu_custom_call.1} parent=11 // pred_check_branch
          %245 = sbr.rel (%p243) target = $region28
        $region27: #{tpu_custom_call.1} parent=11 // pred_region
          %s247 = ssub.s32 2048, 2048
          %248 = vsyncadd [#allocation9], %s247
          %s249 = sshll.u32 [#allocation8], 4
          %s250 = int_to_ptr.vmem [resolvable:$true] %s249
          %255 = dma.hbm_to_vmem [thread:$0]  %s4, 2048, %s250, [#allocation9], 128, 128, 8
        $region28: #{tpu_custom_call.1} parent=11 // pred_fallthru
          _
        // Predicated region
        $region29: #{tpu_custom_call.1} parent=11 // pred_check
          %p256 = pneg %p154
        $region30: #{tpu_custom_call.1} parent=11 // pred_check_branch
          %258 = sbr.rel (%p256) target = $region32
        $region31: #{tpu_custom_call.1} parent=11 // pred_region
          _
        $region32: #{tpu_custom_call.1} parent=11 // pred_fallthru
          _
      $region12: #{tpu_custom_call.1} parent=5 // pred_fallthru
        _
      %p259 = scmp.lt.s32.totalorder %s23, 8
      // Predicated region
      $region33: #{tpu_custom_call.1} parent=5 // pred_check
        %p260 = pneg %p259
      $region34: #{tpu_custom_call.1} parent=5 // pred_check_branch
        %262 = sbr.rel (%p260) target = $region36
      $region35: #{tpu_custom_call.1} parent=5 // pred_region
        // Predicated region
        $region37: #{tpu_custom_call.1} parent=35 // pred_check
          %p263 = pneg %p43
        $region38: #{tpu_custom_call.1} parent=35 // pred_check_branch
          %265 = sbr.rel (%p263) target = $region40
        $region39: #{tpu_custom_call.1} parent=35 // pred_region
          %s266 = sand.u32 %s33, 1
          %s267 = scalar_lea.sflag [#allocation3], %s266
          %s268 = sand.u32 %s33, 1
          %s269 = smul.addr %s268, 8
          %s270 = scalar_lea.vmem [#allocation2], %s269
          %s272 = ssub.s32 128, 128
          %273 = vsyncadd %s267, %s272
          %s274 = smul.addr %s23, 128
          %s275 = scalar_lea.hbm %s0, %s274
          %s277 = sshll.u32 %s270, 4
          %s278 = int_to_ptr.vmem [resolvable:$true] %s277
          %280 = dma.hbm_to_vmem [thread:$0]  %s275, 128, %s278, %s267
        $region40: #{tpu_custom_call.1} parent=35 // pred_fallthru
          _
      $region36: #{tpu_custom_call.1} parent=5 // pred_fallthru
        _
      %p281 = scmp.le.s32.totalorder 1, %s23
      %p282 = scmp.lt.s32.totalorder %s23, 9
      %p283 = pnand %p281, %p282
      %p284 = pneg %p283
      // Predicated region
      $region41: #{tpu_custom_call.1} parent=5 // pred_check
        _
      $region42: #{tpu_custom_call.1} parent=5 // pred_check_branch
        %286 = sbr.rel (%p283) target = $region44
      $region43: #{tpu_custom_call.1} parent=5 // pred_region
        %s287 = ssub.s32 %s23, 1
        %s288 = sand.u32 %s36, 1
        %s289 = scalar_lea.sflag [#allocation3], %s288
        %s290 = sand.u32 %s36, 1
        %s291 = smul.addr %s290, 8
        %s292 = scalar_lea.vmem [#allocation2], %s291
        // Predicated region
        $region45: #{tpu_custom_call.1} parent=43 // pred_check
          %p293 = pneg %p49
        $region46: #{tpu_custom_call.1} parent=43 // pred_check_branch
          %295 = sbr.rel (%p293) target = $region48
        $region47: #{tpu_custom_call.1} parent=43 // pred_region
          %296 = dma.done %s289, 128
        $region48: #{tpu_custom_call.1} parent=43 // pred_fallthru
          _
        // Predicated region
        $region49: #{tpu_custom_call.1} parent=43 // pred_check
          %p297 = pneg %p70
        $region50: #{tpu_custom_call.1} parent=43 // pred_check_branch
          %299 = sbr.rel (%p297) target = $region52
        $region51: #{tpu_custom_call.1} parent=43 // pred_region
          %300 = dma.done [#allocation6], 128
        $region52: #{tpu_custom_call.1} parent=43 // pred_fallthru
          _
        // Predicated region
        $region53: #{tpu_custom_call.1} parent=43 // pred_check
          %p301 = pneg %p91
        $region54: #{tpu_custom_call.1} parent=43 // pred_check_branch
          %303 = sbr.rel (%p301) target = $region56
        $region55: #{tpu_custom_call.1} parent=43 // pred_region
          %304 = dma.done [#allocation6], 4096
        $region56: #{tpu_custom_call.1} parent=43 // pred_fallthru
          _
        // Predicated region
        $region57: #{tpu_custom_call.1} parent=43 // pred_check
          %p305 = pneg %p133
        $region58: #{tpu_custom_call.1} parent=43 // pred_check_branch
          %307 = sbr.rel (%p305) target = $region60
        $region59: #{tpu_custom_call.1} parent=43 // pred_region
          %308 = dma.done [#allocation9], 2048
        $region60: #{tpu_custom_call.1} parent=43 // pred_fallthru
          _
        %s309 = sand.u32 %s36, 1
        %s310 = scalar_lea.sflag [#allocation3], %s309
        %s311 = sand.u32 %s36, 1
        %s312 = smul.addr %s311, 8
        %s313 = scalar_lea.vmem [#allocation2], %s312
        %p314 = pneg %p49
        %p315 = pneg %p46
        %p316 = pneg %p70
        %p317 = pneg %p67
        %p318 = pneg %p91
        %p319 = pneg %p88
        %p320 = pneg %p112
        %p321 = pneg %p109
        %p322 = pneg %p133
        %p323 = pneg %p130
        %p324 = pneg %p154
        %p325 = pneg %p151
        %p326 = pneg %p180
        %p327 = pneg %p177
        %s328 = sand.u32 %s167, 1
        %s329 = scalar_lea.sflag [#allocation4], %s328
        %s330 = sand.u32 %s167, 1
        %s331 = smul.addr %s330, 8
        %s332 = scalar_lea.vmem [#allocation10], %s331
        %p333 = pneg %p201
        %p334 = pneg %p198
        %p335 = scmp.eq.s32.totalorder %s28, 0
        // Predicated region
        $region61: #{tpu_custom_call.1} parent=43 // pred_check
          %p336 = pneg %p335
        $region62: #{tpu_custom_call.1} parent=43 // pred_check_branch
          %338 = sbr.rel (%p336) target = $region64
        $region63: #{tpu_custom_call.1} parent=43 // pred_region
          %v339 = vld [vmem:[#allocation5] sm:$0xff]
          %340 = vst [vmem:[#allocation11] sm:$0xff] %v339
        $region64: #{tpu_custom_call.1} parent=43 // pred_fallthru
          _
        %v341 = vld [vmem:[%s292] sm:$0xff]
        %v342 = vld [vmem:[#allocation11] sm:$0xff]
        %v343 = vld [vmem:[#allocation7] sm:$0xff]
        %v344 = vld [vmem:[#allocation7 + $0x8] sm:$0xff]
        %v345 = vld [vmem:[#allocation7 + $0x10] sm:$0xff]
        %v346 = vld [vmem:[#allocation7 + $0x18] sm:$0xff]
        %v347 = vld [vmem:[#allocation7 + $0x20] sm:$0xff]
        %v348 = vld [vmem:[#allocation7 + $0x28] sm:$0xff]
        %v349 = vld [vmem:[#allocation7 + $0x30] sm:$0xff]
        %v350 = vld [vmem:[#allocation7 + $0x38] sm:$0xff]
        %v351 = vld [vmem:[#allocation7 + $0x40] sm:$0xff]
        %v352 = vld [vmem:[#allocation7 + $0x48] sm:$0xff]
        %v353 = vld [vmem:[#allocation7 + $0x50] sm:$0xff]
        %v354 = vld [vmem:[#allocation7 + $0x58] sm:$0xff]
        %v355 = vld [vmem:[#allocation7 + $0x60] sm:$0xff]
        %v356 = vld [vmem:[#allocation7 + $0x68] sm:$0xff]
        %v357 = vld [vmem:[#allocation7 + $0x70] sm:$0xff]
        %v358 = vld [vmem:[#allocation7 + $0x78] sm:$0xff]
        %v359 = vld [vmem:[#allocation7 + $0x80] sm:$0xff]
        %v360 = vld [vmem:[#allocation7 + $0x88] sm:$0xff]
        %v361 = vld [vmem:[#allocation7 + $0x90] sm:$0xff]
        %v362 = vld [vmem:[#allocation7 + $0x98] sm:$0xff]
        %v363 = vld [vmem:[#allocation7 + $0xa0] sm:$0xff]
        %v364 = vld [vmem:[#allocation7 + $0xa8] sm:$0xff]
        %v365 = vld [vmem:[#allocation7 + $0xb0] sm:$0xff]
        %v366 = vld [vmem:[#allocation7 + $0xb8] sm:$0xff]
        %v367 = vld [vmem:[#allocation7 + $0xc0] sm:$0xff]
        %v368 = vld [vmem:[#allocation7 + $0xc8] sm:$0xff]
        %v369 = vld [vmem:[#allocation7 + $0xd0] sm:$0xff]
        %v370 = vld [vmem:[#allocation7 + $0xd8] sm:$0xff]
        %v371 = vld [vmem:[#allocation7 + $0xe0] sm:$0xff]
        %v372 = vld [vmem:[#allocation7 + $0xe8] sm:$0xff]
        %v373 = vld [vmem:[#allocation7 + $0xf0] sm:$0xff]
        %v374 = vld [vmem:[#allocation7 + $0xf8] sm:$0xff]
        %v375 = vld [vmem:[%s3] sm:$0x1]
        %v377 = vlaneseq
        %v378 = vshrl.u32 %v377, 7
        %v379 = vsub.s32 0, %v378
        %v380 = vrot.slane %v375, %v379
        %382 = vmatprep.subr.mxu0 0.0
        %383 = vmatpush1.msra.mxu0 %v358
        %384 = vmatprep.subr.mxu0 0.0
        %385 = vmatpush1.msra.mxu0 %v357
        %386 = vmatprep.subr.mxu0 0.0
        %387 = vmatpush1.msra.mxu0 %v356
        %388 = vmatprep.subr.mxu0 0.0
        %389 = vmatpush1.msra.mxu0 %v355
        %390 = vmatprep.subr.mxu0 0.0
        %391 = vmatpush1.msra.mxu0 %v354
        %392 = vmatprep.subr.mxu0 0.0
        %393 = vmatpush1.msra.mxu0 %v353
        %394 = vmatprep.subr.mxu0 0.0
        %395 = vmatpush1.msra.mxu0 %v352
        %396 = vmatprep.subr.mxu0 0.0
        %397 = vmatpush1.msra.mxu0 %v351
        %398 = vmatprep.subr.mxu0 0.0
        %399 = vmatpush1.msra.mxu0 %v350
        %400 = vmatprep.subr.mxu0 0.0
        %401 = vmatpush1.msra.mxu0 %v349
        %402 = vmatprep.subr.mxu0 0.0
        %403 = vmatpush1.msra.mxu0 %v348
        %404 = vmatprep.subr.mxu0 0.0
        %405 = vmatpush1.msra.mxu0 %v347
        %406 = vmatprep.subr.mxu0 0.0
        %407 = vmatpush1.msra.mxu0 %v346
        %408 = vmatprep.subr.mxu0 0.0
        %409 = vmatpush1.msra.mxu0 %v345
        %410 = vmatprep.subr.mxu0 0.0
        %411 = vmatpush1.msra.mxu0 %v344
        %412 = vmatprep.subr.mxu0 0.0
        %413 = vmatpush1.msra.mxu0 %v343
        %414 = vmatprep.subr.mxu0 0.0
        %415 = vmatpush2.msra.mxu0 %v374
        %416 = vmatprep.subr.mxu0 0.0
        %417 = vmatpush2.msra.mxu0 %v373
        %418 = vmatprep.subr.mxu0 0.0
        %419 = vmatpush2.msra.mxu0 %v372
        %420 = vmatprep.subr.mxu0 0.0
        %421 = vmatpush2.msra.mxu0 %v371
        %422 = vmatprep.subr.mxu0 0.0
        %423 = vmatpush2.msra.mxu0 %v370
        %424 = vmatprep.subr.mxu0 0.0
        %425 = vmatpush2.msra.mxu0 %v369
        %426 = vmatprep.subr.mxu0 0.0
        %427 = vmatpush2.msra.mxu0 %v368
        %428 = vmatprep.subr.mxu0 0.0
        %429 = vmatpush2.msra.mxu0 %v367
        %430 = vmatprep.subr.mxu0 0.0
        %431 = vmatpush2.msra.mxu0 %v366
        %432 = vmatprep.subr.mxu0 0.0
        %433 = vmatpush2.msra.mxu0 %v365
        %434 = vmatprep.subr.mxu0 0.0
        %435 = vmatpush2.msra.mxu0 %v364
        %436 = vmatprep.subr.mxu0 0.0
        %437 = vmatpush2.msra.mxu0 %v363
        %438 = vmatprep.subr.mxu0 0.0
        %439 = vmatpush2.msra.mxu0 %v362
        %440 = vmatprep.subr.mxu0 0.0
        %441 = vmatpush2.msra.mxu0 %v361
        %442 = vmatprep.subr.mxu0 0.0
        %443 = vmatpush2.msra.mxu0 %v360
        %444 = vmatprep.subr.mxu0 0.0
        %445 = vmatpush2.msra.mxu0 %v359
        %446 = vmatprep.mubr.f32.mxu0 %v342
        %447 = vmatmul.mubr.f32.gmra.mxu0 %v341
        %v448 = vpop.f32.mrf.mxu0
        %v449 = vadd.f32 %v380, %v448
        %v450 = vpop.f32.mrf.mxu0
        %451 = vdwg.mxu0
        %v452 = vtanh.pop %v449
        %453 = vst [vmem:[#allocation11] sm:$0xff] %v452
        %v454 = vld [vmem:[#allocation8] sm:$0xff]
        %v455 = vld [vmem:[#allocation8 + $0x8] sm:$0xff]
        %v456 = vld [vmem:[#allocation8 + $0x10] sm:$0xff]
        %v457 = vld [vmem:[#allocation8 + $0x18] sm:$0xff]
        %v458 = vld [vmem:[#allocation8 + $0x20] sm:$0xff]
        %v459 = vld [vmem:[#allocation8 + $0x28] sm:$0xff]
        %v460 = vld [vmem:[#allocation8 + $0x30] sm:$0xff]
        %v461 = vld [vmem:[#allocation8 + $0x38] sm:$0xff]
        %v462 = vld [vmem:[#allocation8 + $0x40] sm:$0xff]
        %v463 = vld [vmem:[#allocation8 + $0x48] sm:$0xff]
        %v464 = vld [vmem:[#allocation8 + $0x50] sm:$0xff]
        %v465 = vld [vmem:[#allocation8 + $0x58] sm:$0xff]
        %v466 = vld [vmem:[#allocation8 + $0x60] sm:$0xff]
        %v467 = vld [vmem:[#allocation8 + $0x68] sm:$0xff]
        %v468 = vld [vmem:[#allocation8 + $0x70] sm:$0xff]
        %v469 = vld [vmem:[#allocation8 + $0x78] sm:$0xff]
        %v470 = vld [vmem:[%s5] sm:$0x1]
        %v472 = vlaneseq
        %v473 = vshrl.u32 %v472, 7
        %v474 = vsub.s32 0, %v473
        %v475 = vrot.slane %v470, %v474
        %477 = vmatprep.subr.mxu0 0.0
        %478 = vmatpush1.msra.mxu0 %v469
        %479 = vmatprep.subr.mxu0 0.0
        %480 = vmatpush1.msra.mxu0 %v468
        %481 = vmatprep.subr.mxu0 0.0
        %482 = vmatpush1.msra.mxu0 %v467
        %483 = vmatprep.subr.mxu0 0.0
        %484 = vmatpush1.msra.mxu0 %v466
        %485 = vmatprep.subr.mxu0 0.0
        %486 = vmatpush1.msra.mxu0 %v465
        %487 = vmatprep.subr.mxu0 0.0
        %488 = vmatpush1.msra.mxu0 %v464
        %489 = vmatprep.subr.mxu0 0.0
        %490 = vmatpush1.msra.mxu0 %v463
        %491 = vmatprep.subr.mxu0 0.0
        %492 = vmatpush1.msra.mxu0 %v462
        %493 = vmatprep.subr.mxu0 0.0
        %494 = vmatpush1.msra.mxu0 %v461
        %495 = vmatprep.subr.mxu0 0.0
        %496 = vmatpush1.msra.mxu0 %v460
        %497 = vmatprep.subr.mxu0 0.0
        %498 = vmatpush1.msra.mxu0 %v459
        %499 = vmatprep.subr.mxu0 0.0
        %500 = vmatpush1.msra.mxu0 %v458
        %501 = vmatprep.subr.mxu0 0.0
        %502 = vmatpush1.msra.mxu0 %v457
        %503 = vmatprep.subr.mxu0 0.0
        %504 = vmatpush1.msra.mxu0 %v456
        %505 = vmatprep.subr.mxu0 0.0
        %506 = vmatpush1.msra.mxu0 %v455
        %507 = vmatprep.subr.mxu0 0.0
        %508 = vmatpush1.msra.mxu0 %v454
        %509 = vmatprep.subr.mxu0 0.0
        %510 = vmatpush2.msra.mxu0 0.0
        %511 = vmatprep.subr.mxu0 0.0
        %512 = vmatpush2.msra.mxu0 0.0
        %513 = vmatprep.subr.mxu0 0.0
        %514 = vmatpush2.msra.mxu0 0.0
        %515 = vmatprep.subr.mxu0 0.0
        %516 = vmatpush2.msra.mxu0 0.0
        %517 = vmatprep.subr.mxu0 0.0
        %518 = vmatpush2.msra.mxu0 0.0
        %519 = vmatprep.subr.mxu0 0.0
        %520 = vmatpush2.msra.mxu0 0.0
        %521 = vmatprep.subr.mxu0 0.0
        %522 = vmatpush2.msra.mxu0 0.0
        %523 = vmatprep.subr.mxu0 0.0
        %524 = vmatpush2.msra.mxu0 0.0
        %525 = vmatprep.subr.mxu0 0.0
        %526 = vmatpush2.msra.mxu0 0.0
        %527 = vmatprep.subr.mxu0 0.0
        %528 = vmatpush2.msra.mxu0 0.0
        %529 = vmatprep.subr.mxu0 0.0
        %530 = vmatpush2.msra.mxu0 0.0
        %531 = vmatprep.subr.mxu0 0.0
        %532 = vmatpush2.msra.mxu0 0.0
        %533 = vmatprep.subr.mxu0 0.0
        %534 = vmatpush2.msra.mxu0 0.0
        %535 = vmatprep.subr.mxu0 0.0
        %536 = vmatpush2.msra.mxu0 0.0
        %537 = vmatprep.subr.mxu0 0.0
        %538 = vmatpush2.msra.mxu0 0.0
        %539 = vmatprep.subr.mxu0 0.0
        %540 = vmatpush2.msra.mxu0 0.0
        %541 = vmatprep.mubr.f32.mxu0 0.0
        %542 = vmatmul.mubr.f32.gmra.mxu0 %v452
        %v543 = vpop.f32.mrf.mxu0
        %v544 = vadd.f32 %v475, %v543
        %v545 = vpop.f32.mrf.mxu0
        %546 = vdwg.mxu0
        %547 = vst [vmem:[%s332] sm:$0xff] %v544
        %s548 = sand.u32 %s167, 1
        %s549 = scalar_lea.sflag [#allocation4], %s548
        %s550 = sand.u32 %s167, 1
        %s551 = smul.addr %s550, 8
        %s552 = scalar_lea.vmem [#allocation10], %s551
        // Predicated region
        $region65: #{tpu_custom_call.1} parent=43 // pred_check
          %p553 = pneg %p177
        $region66: #{tpu_custom_call.1} parent=43 // pred_check_branch
          %555 = sbr.rel (%p553) target = $region68
        $region67: #{tpu_custom_call.1} parent=43 // pred_region
          %s557 = ssub.s32 128, 128
          %558 = vsyncadd %s549, %s557
          %s559 = smul.addr %s28, 128
          %s560 = scalar_lea.hbm %s6, %s559
          %s562 = sshll.u32 %s552, 4
          %s563 = int_to_ptr.vmem [resolvable:$true] %s562
          %565 = dma.vmem_to_hbm [thread:$0]  %s563, 128, %s560, %s549
        $region68: #{tpu_custom_call.1} parent=43 // pred_fallthru
          _
        // Predicated region
        $region69: #{tpu_custom_call.1} parent=43 // pred_check
          %p566 = pneg %p198
        $region70: #{tpu_custom_call.1} parent=43 // pred_check_branch
          %568 = sbr.rel (%p566) target = $region72
        $region71: #{tpu_custom_call.1} parent=43 // pred_region
          %s570 = ssub.s32 128, 128
          %571 = vsyncadd [#allocation12], %s570
          %s573 = sshll.u32 [#allocation11], 4
          %s574 = int_to_ptr.vmem [resolvable:$true] %s573
          %576 = dma.vmem_to_hbm [thread:$0]  %s574, 128, %s7, [#allocation12]
        $region72: #{tpu_custom_call.1} parent=43 // pred_fallthru
          _
        // Predicated region
        $region73: #{tpu_custom_call.1} parent=43 // pred_check
          %p577 = pneg %p198
        $region74: #{tpu_custom_call.1} parent=43 // pred_check_branch
          %579 = sbr.rel (%p577) target = $region76
        $region75: #{tpu_custom_call.1} parent=43 // pred_region
          %580 = dma.done [#allocation12], 128
        $region76: #{tpu_custom_call.1} parent=43 // pred_fallthru
          _
      $region44: #{tpu_custom_call.1} parent=5 // pred_fallthru
        _
      %p581 = scmp.le.s32.totalorder 2, %s23
      // Predicated region
      $region77: #{tpu_custom_call.1} parent=5 // pred_check
        %p582 = pneg %p581
      $region78: #{tpu_custom_call.1} parent=5 // pred_check_branch
        %584 = sbr.rel (%p582) target = $region80
      $region79: #{tpu_custom_call.1} parent=5 // pred_region
        %s585 = ssub.s32 %s23, 2
        // Predicated region
        $region81: #{tpu_custom_call.1} parent=79 // pred_check
          %p586 = pneg %p183
        $region82: #{tpu_custom_call.1} parent=79 // pred_check_branch
          %588 = sbr.rel (%p586) target = $region84
        $region83: #{tpu_custom_call.1} parent=79 // pred_region
          %s589 = sand.u32 %s168, 1
          %s590 = scalar_lea.sflag [#allocation4], %s589
          %s591 = sand.u32 %s168, 1
          %s592 = smul.addr %s591, 8
          %s593 = scalar_lea.vmem [#allocation10], %s592
          %594 = dma.done %s590, 128
        $region84: #{tpu_custom_call.1} parent=79 // pred_fallthru
          _
      $region80: #{tpu_custom_call.1} parent=5 // pred_fallthru
        _
    $region6: #{tpu_custom_call.1} parent=1 // loop_footer
      %s27 = sadd.s32 1, %s23
    $region7: #{tpu_custom_call.1} parent=1 // loop_footer_branch
      %22 = sbr.rel target = $region3
    $region8: #{tpu_custom_call.1} parent=1 // loop_exit
      _
    %595 = vsyncpa [#allocation3], 1
    %s596 = scalar_lea.sflag [#allocation3], 1
    %597 = vsyncpa %s596, 1
    %598 = vsyncpa [#allocation6], 1
    %599 = vsyncpa [#allocation9], 1
    %600 = vsyncpa [#allocation4], 1
    %s601 = scalar_lea.sflag [#allocation4], 1
    %602 = vsyncpa %s601, 1
    %603 = vsyncpa [#allocation12], 1

</llo_original>
